<compile_context>
chip_gen: v7x
topology: tpu7x:2x2x1
jax: 0.10.0
libtpu: 0.0.40
codegen_flags: <defaults>
</compile_context>

<pallas_src>
import functools

import jax
import jax.numpy as jnp
from jax.experimental import pallas as pl
from jax.experimental.pallas import tpu as pltpu

KH = KW = 4
STRIDE = 2
PAD = 1
EPS = 1e-5
NEG_SLOPE = 0.2


def _round_up(a, b):
    return (a + b - 1) // b * b


def _cdiv(a, b):
    return (a + b - 1) // b


def _tpu_defaults():
    """(block_m, vmem_limit_bytes): conservative for v7x (64 MiB VMEM), bigger on v5e/v6e."""
    block_m, vmem = 256, 48 * 1024 * 1024
    try:
        kind = jax.devices()[0].device_kind.lower()
        if "v5" in kind or "v6" in kind:      # 128 MiB VMEM generations
            block_m, vmem = 512, 96 * 1024 * 1024
    except Exception:
        pass
    return block_m, vmem


# ----------------------------------------------------------------------------
# Pass 1: conv GEMM per tile + per-channel partial sum / sumsq.
# Grid = (num_n [parallel], msplit [parallel], num_m_inner [arbitrary, innermost]).
# The (1, 1, tn) sum/sumsq blocks are resident over the innermost m axis; each
# (msplit, n) pair owns its own partial-stats row so no cross-core reduction is
# needed inside the kernel (the tiny combine happens in the XLA wrapper).
# ----------------------------------------------------------------------------
def conv_stats_kernel(patch_ref, w_ref, conv_ref, sum_ref, sumsq_ref):
    m_idx = pl.program_id(2)

    # MXU GEMM: bf16 inputs, f32 accumulation.
    conv = jnp.dot(patch_ref[...], w_ref[...], preferred_element_type=jnp.float32)
    # bf16 intermediate store (stats below still come from the f32 accumulator).
    conv_ref[...] = conv.astype(conv_ref.dtype)

    @pl.when(m_idx == 0)
    def _init():
        sum_ref[...] = jnp.zeros_like(sum_ref)
        sumsq_ref[...] = jnp.zeros_like(sumsq_ref)

    # Per-channel sum / sum-of-squares (sublane/XLU reductions, off the MXU path).
    # TODO(synk): plain sum/sumsq can cancel catastrophically if |mean| >> std at
    # very large M; switch to shifted sums / Welford combine if tighter accuracy
    # is ever required.
    sum_ref[...] += jnp.sum(conv, axis=0, keepdims=True)[None]
    sumsq_ref[...] += jnp.sum(conv * conv, axis=0, keepdims=True)[None]


# ----------------------------------------------------------------------------
# Pass 2: affine BatchNorm apply + LeakyReLU(0.2); bf16 conv in, f32 out.
# ----------------------------------------------------------------------------
def bn_lrelu_kernel(conv_ref, scale_ref, shift_ref, out_ref):
    y = conv_ref[...].astype(jnp.float32) * scale_ref[...] + shift_ref[...]
    out_ref[...] = jnp.where(y > 0, y, NEG_SLOPE * y)


def unet_down(x, weight, gamma, beta, *, block_m=None, block_n=None,
              vmem_limit_bytes=None):
    """x: (N, Cin, H, W), weight: (Cout, Cin, 4, 4), gamma/beta: (Cout,). Returns NCHW f32."""
    N, Cin, H, W = x.shape
    Cout = weight.shape[0]
    Ho = (H + 2 * PAD - KH) // STRIDE + 1
    Wo = (W + 2 * PAD - KW) // STRIDE + 1
    M = N * Ho * Wo
    K = Cin * KH * KW

    def_bm, def_vmem = _tpu_defaults()
    if block_m is None:
        block_m = def_bm
    if vmem_limit_bytes is None:
        vmem_limit_bytes = def_vmem
    budget = int(vmem_limit_bytes * 0.75)   # headroom for Mosaic scratch / semaphores

    # im2col in bf16 (cast BEFORE patch extraction: half the HBM write, no extra
    # f32 read pass). Feature order is (cin, kh, kw), matching
    # weight.reshape(Cout, Cin*KH*KW); rows are ordered (n, oh, ow).
    patches = jax.lax.conv_general_dilated_patches(
        x.astype(jnp.bfloat16), filter_shape=(KH, KW),
        window_strides=(STRIDE, STRIDE), padding=((PAD, PAD), (PAD, PAD)),
        dimension_numbers=("NCHW", "OIHW", "NHWC")).reshape(M, K)

    # Lane-dense padding: K and Cout up to multiples of 128.
    Kp = _round_up(K, 128)
    Cout_p = _round_up(Cout, 128)

    # --- Pass-1 tile selection -------------------------------------------------
    tm = _round_up(min(block_m, _round_up(M, 16)), 16)

    def p1_bytes(tm_, tn_):   # double-buffered bf16 tiles + tiny f32 stats blocks
        return 4 * (tm_ * Kp + Kp * tn_ + tm_ * tn_) + 16 * tn_

    # Prefer tn == Cout_p (num_n == 1) so the patch matrix streams from HBM once.
    cands = [Cout_p, 512, 256, 128]
    if block_n is not None:
        bn_cap = max(_round_up(block_n, 128), 128)
        cands = [c for c in cands if c <= bn_cap] or [128]
    tn = None
    for cand in cands:
        if cand <= Cout_p and Cout_p % cand == 0 and p1_bytes(tm, cand) <= budget:
            tn = cand
            break
    if tn is None:
        tn = 128
        while p1_bytes(tm, tn) > budget and tm > 16:
            tm = max(16, _round_up(tm // 2, 16))

    num_n = Cout_p // tn
    num_m_total = _cdiv(M, tm)
    msplit = 2 if num_m_total >= 2 else 1      # split rows across the 2 v7x cores
    num_m_inner = _cdiv(num_m_total, msplit)
    M_p = tm * msplit * num_m_inner

    patches_p = jnp.pad(patches, ((0, M_p - M), (0, Kp - K)))          # bf16, zero pad
    w_p = jnp.zeros((Kp, Cout_p), jnp.bfloat16).at[:K, :Cout].set(
        weight.reshape(Cout, K).T.astype(jnp.bfloat16))
    gamma_p = jnp.ones((Cout_p,), jnp.float32).at[:Cout].set(gamma.astype(jnp.float32))
    beta_p = jnp.zeros((Cout_p,), jnp.float32).at[:Cout].set(beta.astype(jnp.float32))

    # ---- Pass 1: conv tiles (bf16) + per-half per-channel partial sums. ----
    conv, psum, psumsq = pl.pallas_call(
        conv_stats_kernel,
        grid=(num_n, msplit, num_m_inner),
        in_specs=[
            pl.BlockSpec((tm, Kp), lambda n, c, m: (c * num_m_inner + m, 0)),
            pl.BlockSpec((Kp, tn), lambda n, c, m: (0, n)),
        ],
        out_specs=[
            pl.BlockSpec((tm, tn), lambda n, c, m: (c * num_m_inner + m, n)),
            pl.BlockSpec((1, 1, tn), lambda n, c, m: (c, 0, n)),
            pl.BlockSpec((1, 1, tn), lambda n, c, m: (c, 0, n)),
        ],
        out_shape=(
            jax.ShapeDtypeStruct((M_p, Cout_p), jnp.bfloat16),
            jax.ShapeDtypeStruct((msplit, 1, Cout_p), jnp.float32),
            jax.ShapeDtypeStruct((msplit, 1, Cout_p), jnp.float32),
        ),
        compiler_params=pltpu.CompilerParams(
            dimension_semantics=("parallel", "parallel", "arbitrary"),
            vmem_limit_bytes=vmem_limit_bytes),
    )(patches_p, w_p)

    # Tiny finalize in XLA: combine per-half partials -> affine scale/shift.
    # Zero-padded rows contribute exactly 0 to the sums, so dividing by the true
    # M keeps mean/var exact. Padded channels get scale = 1*rsqrt(eps) (~316) with
    # conv == 0, so their outputs stay exactly 0 and are sliced off below.
    sums = jnp.sum(psum, axis=(0, 1))
    sumsqs = jnp.sum(psumsq, axis=(0, 1))
    mean = sums * (1.0 / M)
    var = jnp.maximum(sumsqs * (1.0 / M) - mean * mean, 0.0)   # biased var (training BN)
    scale = gamma_p * jax.lax.rsqrt(var + EPS)
    shift = beta_p - mean * scale
    scale2d = scale.reshape(1, Cout_p)
    shift2d = shift.reshape(1, Cout_p)

    # ---- Pass 2: normalize + LeakyReLU with large lane-dense streaming tiles. ----
    blocks_m = M_p // tm
    rows_cap = max(tm, min(2048, (budget // (12 * Cout_p)) // 16 * 16))
    d_best = 1
    for d in range(1, blocks_m + 1):
        if blocks_m % d == 0 and tm * d <= rows_cap:
            d_best = d
    tm2 = tm * d_best

    out = pl.pallas_call(
        bn_lrelu_kernel,
        grid=(M_p // tm2, 1),
        in_specs=[
            pl.BlockSpec((tm2, Cout_p), lambda m, n: (m, n)),
            pl.BlockSpec((1, Cout_p), lambda m, n: (0, n)),
            pl.BlockSpec((1, Cout_p), lambda m, n: (0, n)),
        ],
        out_specs=pl.BlockSpec((tm2, Cout_p), lambda m, n: (m, n)),
        out_shape=jax.ShapeDtypeStruct((M_p, Cout_p), jnp.float32),
        compiler_params=pltpu.CompilerParams(
            dimension_semantics=("parallel", "parallel"),
            vmem_limit_bytes=vmem_limit_bytes),
    )(conv, scale2d, shift2d)

    # TODO(synk): returning NHWC (or fusing an NCHW 4-D out_spec when Wo >= 128)
    # would remove this extra XLA slice+transpose HBM round-trip; kept here for
    # PyTorch-module interface parity.
    out = out[:M, :Cout].reshape(N, Ho, Wo, Cout)
    return out.transpose(0, 3, 1, 2)


def unet_down_ref(x, weight, gamma, beta):
    """Pure-JAX reference (same semantics as the PyTorch module in training mode)."""
    conv = jax.lax.conv_general_dilated(
        x.astype(jnp.float32), weight.astype(jnp.float32),
        window_strides=(STRIDE, STRIDE), padding=((PAD, PAD), (PAD, PAD)),
        dimension_numbers=("NCHW", "OIHW", "NCHW"),
        precision=jax.lax.Precision.HIGHEST)
    mean = conv.mean(axis=(0, 2, 3), keepdims=True)
    var = conv.var(axis=(0, 2, 3), keepdims=True)
    y = (conv - mean) * jax.lax.rsqrt(var + EPS)
    y = y * gamma.reshape(1, -1, 1, 1) + beta.reshape(1, -1, 1, 1)
    return jnp.where(y > 0, y, NEG_SLOPE * y)


if __name__ == "__main__":
    in_size, out_size = 4, 8
    N, H, W = 2, 16, 16

    key = jax.random.PRNGKey(0)
    kx, kw_, kg, kb = jax.random.split(key, 4)
    x = jax.random.normal(kx, (N, in_size, H, W), dtype=jnp.float32)
    weight = jax.random.normal(kw_, (out_size, in_size, KH, KW), dtype=jnp.float32) * 0.05
    gamma = 1.0 + 0.1 * jax.random.normal(kg, (out_size,), dtype=jnp.float32)
    beta = 0.1 * jax.random.normal(kb, (out_size,), dtype=jnp.float32)

    y_ref = unet_down_ref(x, weight, gamma, beta)

    # Small row tile so the multi-tile stats accumulation + 2-way m-split path is
    # exercised even at toy shapes (M = 128 -> 4 row tiles -> 2 per half).
    fn_small = jax.jit(functools.partial(unet_down, block_m=32))
    y = jax.block_until_ready(fn_small(x, weight, gamma, beta))
    assert y.shape == (N, out_size, H // 2, W // 2), y.shape
    max_err = float(jnp.max(jnp.abs(y - y_ref)))
    # bf16 MXU inputs + bf16 conv intermediate (f32 accumulation/BN math).
    assert max_err < 5e-2, max_err

    # Default auto-tuned tiling path (single row tile, num_n == 1).
    y2 = jax.block_until_ready(jax.jit(unet_down)(x, weight, gamma, beta))
    max_err2 = float(jnp.max(jnp.abs(y2 - y_ref)))
    assert max_err2 < 5e-2, max_err2

    print("KERNEL_OK")
</pallas_src>

<mosaic_0001>
module attributes {stable_mosaic.version = 11 : i64} {
  func.func @conv_stats_kernel(%arg0: i32, %arg1: i32, %arg2: i32, %arg3: memref<32x128xbf16, #tpu.memory_space<vmem>>, %arg4: memref<128x128xbf16, #tpu.memory_space<vmem>>, %arg5: memref<32x128xbf16, #tpu.memory_space<vmem>>, %arg6: memref<1x1x128xf32, #tpu.memory_space<vmem>>, %arg7: memref<1x1x128xf32, #tpu.memory_space<vmem>>) attributes {dimension_semantics = [#tpu.dimension_semantics<parallel>, #tpu.dimension_semantics<parallel>, #tpu.dimension_semantics<arbitrary>], iteration_bounds = array<i64: 1, 2, 2>, scalar_prefetch = 0 : i64, scratch_operands = 0 : i64, tpu.core_type = #tpu.core_type<tc>, window_params = [{transform_indices = @transform_0, window_bounds = array<i64: 32, 128>}, {transform_indices = @transform_1, window_bounds = array<i64: 128, 128>}, {transform_indices = @transform_2, window_bounds = array<i64: 32, 128>}, {transform_indices = @transform_3, window_bounds = array<i64: 1, 1, 128>}, {transform_indices = @transform_4, window_bounds = array<i64: 1, 1, 128>}]} {
    %c0 = arith.constant 0 : index
    %c0_0 = arith.constant 0 : index
    %0 = vector.load %arg3[%c0, %c0_0] : memref<32x128xbf16, #tpu.memory_space<vmem>>, vector<32x128xbf16>
    %c0_1 = arith.constant 0 : index
    %c0_2 = arith.constant 0 : index
    %1 = vector.load %arg4[%c0_1, %c0_2] : memref<128x128xbf16, #tpu.memory_space<vmem>>, vector<128x128xbf16>
    %cst = arith.constant dense<0.000000e+00> : vector<32x128xf32>
    %2 = tpu.matmul %0, %1, %cst {dimension_numbers = #tpu.dot_dimension_numbers<[1], [0], [0], [1], [0, 0, 1, 1], [], []>} : vector<32x128xbf16>, vector<128x128xbf16>, vector<32x128xf32> -> vector<32x128xf32>
    %3 = arith.truncf %2 : vector<32x128xf32> to vector<32x128xbf16>
    %c0_3 = arith.constant 0 : index
    %c0_4 = arith.constant 0 : index
    %4 = vector.load %arg5[%c0_3, %c0_4] : memref<32x128xbf16, #tpu.memory_space<vmem>>, vector<32x128xbf16>
    tpu.vector_store %arg5[%c0_3, %c0_4], %3 {strides = array<i32>} : memref<32x128xbf16, #tpu.memory_space<vmem>>, vector<32x128xbf16>,
    %c0_i32 = arith.constant 0 : i32
    %5 = arith.cmpi eq, %arg2, %c0_i32 : i32
    %6 = arith.extui %5 : i1 to i32
    %c0_i32_5 = arith.constant 0 : i32
    %7 = arith.cmpi ne, %6, %c0_i32_5 : i32
    scf.if %7 {
      %cst_20 = arith.constant 0.000000e+00 : f32
      %21 = vector.broadcast %cst_20 : f32 to vector<1x1x128xf32>
      %c0_21 = arith.constant 0 : index
      %c0_22 = arith.constant 0 : index
      %c0_23 = arith.constant 0 : index
      %22 = vector.load %arg6[%c0_21, %c0_22, %c0_23] : memref<1x1x128xf32, #tpu.memory_space<vmem>>, vector<1x1x128xf32>
      tpu.vector_store %arg6[%c0_21, %c0_22, %c0_23], %21 {strides = array<i32>} : memref<1x1x128xf32, #tpu.memory_space<vmem>>, vector<1x1x128xf32>,
      %cst_24 = arith.constant 0.000000e+00 : f32
      %23 = vector.broadcast %cst_24 : f32 to vector<1x1x128xf32>
      %c0_25 = arith.constant 0 : index
      %c0_26 = arith.constant 0 : index
      %c0_27 = arith.constant 0 : index
      %24 = vector.load %arg7[%c0_25, %c0_26, %c0_27] : memref<1x1x128xf32, #tpu.memory_space<vmem>>, vector<1x1x128xf32>
      tpu.vector_store %arg7[%c0_25, %c0_26, %c0_27], %23 {strides = array<i32>} : memref<1x1x128xf32, #tpu.memory_space<vmem>>, vector<1x1x128xf32>,
    } else {
    }
    %c0_6 = arith.constant 0 : index
    %c0_7 = arith.constant 0 : index
    %c0_8 = arith.constant 0 : index
    %8 = vector.load %arg6[%c0_6, %c0_7, %c0_8] : memref<1x1x128xf32, #tpu.memory_space<vmem>>, vector<1x1x128xf32>
    %cst_9 = arith.constant dense<0.000000e+00> : vector<128xf32>
    %9 = vector.multi_reduction <add>, %2, %cst_9 [0] : vector<32x128xf32> to vector<128xf32>
    %10 = vector.shape_cast %9 : vector<128xf32> to vector<1x128xf32>
    %11 = vector.shape_cast %10 : vector<1x128xf32> to vector<1x1x128xf32>
    %12 = arith.addf %8, %11 : vector<1x1x128xf32>
    %c0_10 = arith.constant 0 : index
    %c0_11 = arith.constant 0 : index
    %c0_12 = arith.constant 0 : index
    %13 = vector.load %arg6[%c0_10, %c0_11, %c0_12] : memref<1x1x128xf32, #tpu.memory_space<vmem>>, vector<1x1x128xf32>
    tpu.vector_store %arg6[%c0_10, %c0_11, %c0_12], %12 {strides = array<i32>} : memref<1x1x128xf32, #tpu.memory_space<vmem>>, vector<1x1x128xf32>,
    %c0_13 = arith.constant 0 : index
    %c0_14 = arith.constant 0 : index
    %c0_15 = arith.constant 0 : index
    %14 = vector.load %arg7[%c0_13, %c0_14, %c0_15] : memref<1x1x128xf32, #tpu.memory_space<vmem>>, vector<1x1x128xf32>
    %15 = arith.mulf %2, %2 : vector<32x128xf32>
    %cst_16 = arith.constant dense<0.000000e+00> : vector<128xf32>
    %16 = vector.multi_reduction <add>, %15, %cst_16 [0] : vector<32x128xf32> to vector<128xf32>
    %17 = vector.shape_cast %16 : vector<128xf32> to vector<1x128xf32>
    %18 = vector.shape_cast %17 : vector<1x128xf32> to vector<1x1x128xf32>
    %19 = arith.addf %14, %18 : vector<1x1x128xf32>
    %c0_17 = arith.constant 0 : index
    %c0_18 = arith.constant 0 : index
    %c0_19 = arith.constant 0 : index
    %20 = vector.load %arg7[%c0_17, %c0_18, %c0_19] : memref<1x1x128xf32, #tpu.memory_space<vmem>>, vector<1x1x128xf32>
    tpu.vector_store %arg7[%c0_17, %c0_18, %c0_19], %19 {strides = array<i32>} : memref<1x1x128xf32, #tpu.memory_space<vmem>>, vector<1x1x128xf32>,
    return
  }
  func.func @transform_0(%arg0: i32, %arg1: i32, %arg2: i32) -> (i32, i32) {
    %c2_i32 = arith.constant 2 : i32
    %0 = arith.muli %arg1, %c2_i32 : i32
    %1 = arith.addi %0, %arg2 : i32
    %c0_i32 = arith.constant 0 : i32
    %c0_i32_0 = arith.constant 0 : i32
    return %1, %c0_i32 : i32, i32
  }
  func.func @transform_1(%arg0: i32, %arg1: i32, %arg2: i32) -> (i32, i32) {
    %c0_i32 = arith.constant 0 : i32
    %c0_i32_0 = arith.constant 0 : i32
    return %c0_i32, %arg0 : i32, i32
  }
  func.func @transform_2(%arg0: i32, %arg1: i32, %arg2: i32) -> (i32, i32) {
    %c2_i32 = arith.constant 2 : i32
    %0 = arith.muli %arg1, %c2_i32 : i32
    %1 = arith.addi %0, %arg2 : i32
    %c0_i32 = arith.constant 0 : i32
    return %1, %arg0 : i32, i32
  }
  func.func @transform_3(%arg0: i32, %arg1: i32, %arg2: i32) -> (i32, i32, i32) {
    %c0_i32 = arith.constant 0 : i32
    %c0_i32_0 = arith.constant 0 : i32
    return %arg1, %c0_i32, %arg0 : i32, i32, i32
  }
  func.func @transform_4(%arg0: i32, %arg1: i32, %arg2: i32) -> (i32, i32, i32) {
    %c0_i32 = arith.constant 0 : i32
    %c0_i32_0 = arith.constant 0 : i32
    return %arg1, %c0_i32, %arg0 : i32, i32, i32
  }
}

module attributes {stable_mosaic.version = 11 : i64} {
  func.func @bn_lrelu_kernel(%arg0: i32, %arg1: i32, %arg2: memref<128x128xbf16, #tpu.memory_space<vmem>>, %arg3: memref<1x128xf32, #tpu.memory_space<vmem>>, %arg4: memref<1x128xf32, #tpu.memory_space<vmem>>, %arg5: memref<128x128xf32, #tpu.memory_space<vmem>>) attributes {dimension_semantics = [#tpu.dimension_semantics<parallel>, #tpu.dimension_semantics<parallel>], iteration_bounds = array<i64: 1, 1>, scalar_prefetch = 0 : i64, scratch_operands = 0 : i64, tpu.core_type = #tpu.core_type<tc>, window_params = [{transform_indices = @transform_0, window_bounds = array<i64: 128, 128>}, {transform_indices = @transform_1, window_bounds = array<i64: 1, 128>}, {transform_indices = @transform_2, window_bounds = array<i64: 1, 128>}, {transform_indices = @transform_3, window_bounds = array<i64: 128, 128>}]} {
    %c0 = arith.constant 0 : index
    %c0_0 = arith.constant 0 : index
    %0 = vector.load %arg2[%c0, %c0_0] : memref<128x128xbf16, #tpu.memory_space<vmem>>, vector<128x128xbf16>
    %1 = arith.extf %0 : vector<128x128xbf16> to vector<128x128xf32>
    %c0_1 = arith.constant 0 : index
    %c0_2 = arith.constant 0 : index
    %2 = vector.load %arg3[%c0_1, %c0_2] : memref<1x128xf32, #tpu.memory_space<vmem>>, vector<1x128xf32>
    %3 = vector.broadcast %2 : vector<1x128xf32> to vector<128x128xf32>
    %4 = arith.mulf %1, %3 : vector<128x128xf32>
    %c0_3 = arith.constant 0 : index
    %c0_4 = arith.constant 0 : index
    %5 = vector.load %arg4[%c0_3, %c0_4] : memref<1x128xf32, #tpu.memory_space<vmem>>, vector<1x128xf32>
    %6 = vector.broadcast %5 : vector<1x128xf32> to vector<128x128xf32>
    %7 = arith.addf %4, %6 : vector<128x128xf32>
    %cst = arith.constant 0.000000e+00 : f32
    %8 = vector.broadcast %cst : f32 to vector<128x128xf32>
    %9 = arith.cmpf ogt, %7, %8 : vector<128x128xf32>
    %cst_5 = arith.constant 2.000000e-01 : f32
    %10 = vector.broadcast %cst_5 : f32 to vector<128x128xf32>
    %11 = arith.mulf %10, %7 : vector<128x128xf32>
    %12 = arith.select %9, %7, %11 : vector<128x128xi1>, vector<128x128xf32>
    %c0_6 = arith.constant 0 : index
    %c0_7 = arith.constant 0 : index
    %13 = vector.load %arg5[%c0_6, %c0_7] : memref<128x128xf32, #tpu.memory_space<vmem>>, vector<128x128xf32>
    tpu.vector_store %arg5[%c0_6, %c0_7], %12 {strides = array<i32>} : memref<128x128xf32, #tpu.memory_space<vmem>>, vector<128x128xf32>,
    return
  }
  func.func @transform_0(%arg0: i32, %arg1: i32) -> (i32, i32) {
    %c0_i32 = arith.constant 0 : i32
    return %arg0, %arg1 : i32, i32
  }
  func.func @transform_1(%arg0: i32, %arg1: i32) -> (i32, i32) {
    %c0_i32 = arith.constant 0 : i32
    %c0_i32_0 = arith.constant 0 : i32
    return %c0_i32, %arg1 : i32, i32
  }
  func.func @transform_2(%arg0: i32, %arg1: i32) -> (i32, i32) {
    %c0_i32 = arith.constant 0 : i32
    %c0_i32_0 = arith.constant 0 : i32
    return %c0_i32, %arg1 : i32, i32
  }
  func.func @transform_3(%arg0: i32, %arg1: i32) -> (i32, i32) {
    %c0_i32 = arith.constant 0 : i32
    return %arg0, %arg1 : i32, i32
  }
}

</mosaic_0001>

<llo_original>
// kernel: unet_down.2
$region0: #{unet_down.2}
  #allocation0 [shape = 'u32[]', space=smem, size = 0x4, offset = 0x4, fixed_abs, tag = 'smem constant byte address 0x4 - core index']
  #allocation1 [shape = 'u32[144,128]{1,0:T(1,128)}', space=vmem, size = 0x12000, scoped, tag = 'internal scratch']
  %s0 = inlined_call_operand.vmem [shape: bf16[128,128], index: 0, kind: input, shape index: {}]
  %s1 = inlined_call_operand.vmem [shape: bf16[128,128], index: 1, kind: input, shape index: {}]
  %s2 = inlined_call_operand.vmem [shape: bf16[128,128], index: 2, kind: output, shape index: {0}]
  %s3 = inlined_call_operand.vmem [shape: f32[2,1,128], index: 3, kind: output, shape index: {1}]
  %s4 = inlined_call_operand.vmem [shape: f32[2,1,128], index: 4, kind: output, shape index: {2}]
  %5 = xla_tuple %s2, %s3, %s4
  %s6 = sld [smem:[#allocation0]]
  $region61: #{unet_down.2} parent=0
    _
  %s8 = ssub.s32 1, %s6
  %s9 = scalar_select 0, %s8, %s6
  loop: start=0, step=1, limit=6
  $region2: #{unet_down.2} parent=0 // loop_pre_header
    _
  $region3: #{unet_down.2} parent=0 // loop_header
    %s11 = sphi 0, %s15
    %p12 = scmp.ge.s32.totalorder %s11, 6
    %s18 = sphi 0, %s37
    %s19 = sphi 0, %s33
    %s20 = sphi 0, %s29
    %s21 = sphi 0, %s18
    %s22 = sphi 0, %s19
    %s23 = sphi 0, %s20
    %s24 = sphi 0, %s21
    %s25 = sphi 0, %s22
    %s26 = sphi 0, %s23
    %s44 = sphi 0, %s46
    %s47 = sphi 0, %s44
    %s48 = sphi 0, %s47
    %s64 = sphi 0, %s48
    %s70 = sphi 0, %s72
    %s73 = sphi 0, %s70
    %s74 = sphi 0, %s73
    %s90 = sphi 0, %s74
    %s102 = sphi 0, %s104
    %s105 = sphi 0, %s102
    %s106 = sphi 0, %s105
    %s122 = sphi 0, %s106
    %s130 = sphi 0, %s132
    %s133 = sphi 0, %s130
    %s134 = sphi 0, %s133
    %s150 = sphi 0, %s134
    %s158 = sphi 0, %s160
    %s161 = sphi 0, %s158
    %s162 = sphi 0, %s161
    %s178 = sphi 0, %s162
  $region4: #{unet_down.2} parent=0 // loop_header_branch
    %14 = sbr.rel (%p12) target = $region8
  $region5: #{unet_down.2} parent=0 // loop_body
    %s16 = ssub.s32 %s11, 1
    %s17 = ssub.s32 %s11, 2
    %s27 = sadd.s32 1, %s20
    %p28 = scmp.ge.s32.totalorder %s27, 2
    %s29 = scalar_select %p28, 0, %s27
    %s30 = sadd.s32 1, %s19
    %s31 = scalar_select %p28, %s30, %s19
    %p32 = scmp.ge.s32.totalorder %s31, 2
    %s33 = scalar_select %p32, 0, %s31
    %s34 = sadd.s32 1, %s18
    %s35 = scalar_select %p32, %s34, %s18
    %p36 = scmp.ge.s32.totalorder %s35, 1
    %s37 = scalar_select %p36, 0, %s35
    %s38 = smul.u32 %s19, 2
    %s39 = sadd.s32 %s38, %s20
    %s40 = smul.u32 %s33, 2
    %s41 = sadd.s32 %s40, %s29
    %s42 = ssub.s32 %s39, %s41
    %p43 = scmp.eq.s32.totalorder %s42, 0
    %s45 = sadd.s32 %s44, 1
    %s46 = scalar_select %p43, %s44, %s45
    %p49 = pneg %p43
    %p50 = scmp.eq.s32.totalorder %s11, 3
    %p51 = por %p49, %p50
    %p52 = scmp.ne.s32.totalorder %s44, %s47
    %p53 = scmp.eq.s32.totalorder %s11, 0
    %p54 = por %p52, %p53
    %p55 = scmp.ne.s32.totalorder %s44, %s47
    %p56 = scmp.eq.s32.totalorder %s16, 3
    %p57 = por %p55, %p56
    %p58 = scmp.ne.s32.totalorder %s47, %s48
    %p59 = scmp.eq.s32.totalorder %s16, 0
    %p60 = por %p58, %p59
    %p61 = scmp.ne.s32.totalorder %s47, %s48
    %p62 = scmp.eq.s32.totalorder %s17, 3
    %p63 = por %p61, %p62
    %p65 = scmp.ne.s32.totalorder %s48, %s64
    %p66 = scmp.eq.s32.totalorder %s17, 0
    %p67 = por %p65, %p66
    %s68 = ssub.s32 %s18, %s37
    %p69 = scmp.eq.s32.totalorder %s68, 0
    %s71 = sadd.s32 %s70, 1
    %s72 = scalar_select %p69, %s70, %s71
    %p75 = pneg %p69
    %p76 = scmp.eq.s32.totalorder %s11, 3
    %p77 = por %p75, %p76
    %p78 = scmp.ne.s32.totalorder %s70, %s73
    %p79 = scmp.eq.s32.totalorder %s11, 0
    %p80 = por %p78, %p79
    %p81 = scmp.ne.s32.totalorder %s70, %s73
    %p82 = scmp.eq.s32.totalorder %s16, 3
    %p83 = por %p81, %p82
    %p84 = scmp.ne.s32.totalorder %s73, %s74
    %p85 = scmp.eq.s32.totalorder %s16, 0
    %p86 = por %p84, %p85
    %p87 = scmp.ne.s32.totalorder %s73, %s74
    %p88 = scmp.eq.s32.totalorder %s17, 3
    %p89 = por %p87, %p88
    %p91 = scmp.ne.s32.totalorder %s74, %s90
    %p92 = scmp.eq.s32.totalorder %s17, 0
    %p93 = por %p91, %p92
    %s94 = smul.u32 %s19, 2
    %s95 = sadd.s32 %s94, %s20
    %s96 = smul.u32 %s33, 2
    %s97 = sadd.s32 %s96, %s29
    %s98 = ssub.s32 %s95, %s97
    %s99 = ssub.s32 %s18, %s37
    %s100 = sor.u32 %s98, %s99
    %p101 = scmp.eq.s32.totalorder %s100, 0
    %s103 = sadd.s32 %s102, 1
    %s104 = scalar_select %p101, %s102, %s103
    %p107 = pneg %p101
    %p108 = scmp.eq.s32.totalorder %s11, 3
    %p109 = por %p107, %p108
    %p110 = scmp.ne.s32.totalorder %s102, %s105
    %p111 = scmp.eq.s32.totalorder %s11, 0
    %p112 = por %p110, %p111
    %p113 = scmp.ne.s32.totalorder %s102, %s105
    %p114 = scmp.eq.s32.totalorder %s16, 3
    %p115 = por %p113, %p114
    %p116 = scmp.ne.s32.totalorder %s105, %s106
    %p117 = scmp.eq.s32.totalorder %s16, 0
    %p118 = por %p116, %p117
    %p119 = scmp.ne.s32.totalorder %s105, %s106
    %p120 = scmp.eq.s32.totalorder %s17, 3
    %p121 = por %p119, %p120
    %p123 = scmp.ne.s32.totalorder %s106, %s122
    %p124 = scmp.eq.s32.totalorder %s17, 0
    %p125 = por %p123, %p124
    %s126 = ssub.s32 %s19, %s33
    %s127 = ssub.s32 %s18, %s37
    %s128 = sor.u32 %s126, %s127
    %p129 = scmp.eq.s32.totalorder %s128, 0
    %s131 = sadd.s32 %s130, 1
    %s132 = scalar_select %p129, %s130, %s131
    %p135 = pneg %p129
    %p136 = scmp.eq.s32.totalorder %s11, 3
    %p137 = por %p135, %p136
    %p138 = scmp.ne.s32.totalorder %s130, %s133
    %p139 = scmp.eq.s32.totalorder %s11, 0
    %p140 = por %p138, %p139
    %p141 = scmp.ne.s32.totalorder %s130, %s133
    %p142 = scmp.eq.s32.totalorder %s16, 3
    %p143 = por %p141, %p142
    %p144 = scmp.ne.s32.totalorder %s133, %s134
    %p145 = scmp.eq.s32.totalorder %s16, 0
    %p146 = por %p144, %p145
    %p147 = scmp.ne.s32.totalorder %s133, %s134
    %p148 = scmp.eq.s32.totalorder %s17, 3
    %p149 = por %p147, %p148
    %p151 = scmp.ne.s32.totalorder %s134, %s150
    %p152 = scmp.eq.s32.totalorder %s17, 0
    %p153 = por %p151, %p152
    %s154 = ssub.s32 %s19, %s33
    %s155 = ssub.s32 %s18, %s37
    %s156 = sor.u32 %s154, %s155
    %p157 = scmp.eq.s32.totalorder %s156, 0
    %s159 = sadd.s32 %s158, 1
    %s160 = scalar_select %p157, %s158, %s159
    %p163 = pneg %p157
    %p164 = scmp.eq.s32.totalorder %s11, 3
    %p165 = por %p163, %p164
    %p166 = scmp.ne.s32.totalorder %s158, %s161
    %p167 = scmp.eq.s32.totalorder %s11, 0
    %p168 = por %p166, %p167
    %p169 = scmp.ne.s32.totalorder %s158, %s161
    %p170 = scmp.eq.s32.totalorder %s16, 3
    %p171 = por %p169, %p170
    %p172 = scmp.ne.s32.totalorder %s161, %s162
    %p173 = scmp.eq.s32.totalorder %s16, 0
    %p174 = por %p172, %p173
    %p175 = scmp.ne.s32.totalorder %s161, %s162
    %p176 = scmp.eq.s32.totalorder %s17, 3
    %p177 = por %p175, %p176
    %p179 = scmp.ne.s32.totalorder %s162, %s178
    %p180 = scmp.eq.s32.totalorder %s17, 0
    %p181 = por %p179, %p180
    %p182 = scmp.le.s32.totalorder 1, %s11
    %p183 = scmp.lt.s32.totalorder %s11, 5
    %p184 = pnand %p182, %p183
    %p185 = pneg %p184
    // Predicated region
    $region9: #{unet_down.2} parent=5 // pred_check
      _
    $region10: #{unet_down.2} parent=5 // pred_check_branch
      %187 = sbr.rel (%p184) target = $region12
    $region11: #{unet_down.2} parent=5 // pred_region
      %s188 = ssub.s32 %s11, 1
      // Predicated region
      $region13: #{unet_down.2} parent=11 // pred_check
        %p189 = pneg %p86
      $region14: #{unet_down.2} parent=11 // pred_check_branch
        %191 = sbr.rel (%p189) target = $region16
      $region15: #{unet_down.2} parent=11 // pred_region
        %p192 = scmp.lt.s32.totalorder %s21, 0
        %s193 = scalar_select %p192, %s21, 0
        %s194 = smul.addr %s193, 4
        %s195 = scalar_lea.vmem %s1, %s194
      $region16: #{unet_down.2} parent=11 // pred_fallthru
        _
    $region12: #{unet_down.2} parent=5 // pred_fallthru
      _
    %p196 = scmp.lt.s32.totalorder %s11, 4
    // Predicated region
    $region17: #{unet_down.2} parent=5 // pred_check
      %p197 = pneg %p196
    $region18: #{unet_down.2} parent=5 // pred_check_branch
      %199 = sbr.rel (%p197) target = $region20
    $region19: #{unet_down.2} parent=5 // pred_region
      // Predicated region
      $region21: #{unet_down.2} parent=19 // pred_check
        %p200 = pneg %p54
      $region22: #{unet_down.2} parent=19 // pred_check_branch
        %202 = sbr.rel (%p200) target = $region24
      $region23: #{unet_down.2} parent=19 // pred_region
        %s203 = smul.u32 %s19, 2
        %s204 = sadd.s32 %s203, %s20
        %s205 = smul.u32 4, %s204
        %p206 = scmp.lt.s32.totalorder %s205, 15
        %s207 = scalar_select %p206, %s205, 15
        %s208 = smul.addr %s207, 4
        %s209 = scalar_lea.vmem %s0, %s208
        %s210 = smul.u32 %s19, 2
        %s211 = sadd.s32 %s210, %s20
        %s212 = smul.u32 4, %s211
      $region24: #{unet_down.2} parent=19 // pred_fallthru
        _
    $region20: #{unet_down.2} parent=5 // pred_fallthru
      _
    %p213 = scmp.le.s32.totalorder 1, %s11
    %p214 = scmp.lt.s32.totalorder %s11, 5
    %p215 = pnand %p213, %p214
    %p216 = pneg %p215
    // Predicated region
    $region25: #{unet_down.2} parent=5 // pred_check
      _
    $region26: #{unet_down.2} parent=5 // pred_check_branch
      %218 = sbr.rel (%p215) target = $region28
    $region27: #{unet_down.2} parent=5 // pred_region
      %s219 = ssub.s32 %s11, 1
      %s220 = smul.u32 %s22, 2
      %s221 = sadd.s32 %s220, %s23
      %s222 = smul.u32 4, %s221
      %p223 = scmp.lt.s32.totalorder %s222, 15
      %s224 = scalar_select %p223, %s222, 15
      %s225 = smul.addr %s224, 4
      %s226 = scalar_lea.vmem %s0, %s225
      %p227 = pneg %p60
      %p228 = pneg %p57
      %p229 = scmp.lt.s32.totalorder %s21, 0
      %s230 = scalar_select %p229, %s21, 0
      %s231 = smul.addr %s230, 4
      %s232 = scalar_lea.vmem %s1, %s231
      %p233 = pneg %p86
      %p234 = pneg %p83
      %p235 = pneg %p118
      %p236 = pneg %p115
      %s237 = smul.u32 %s22, 2
      %s238 = sadd.s32 %s237, %s23
      %s239 = smul.u32 4, %s238
      %p240 = scmp.lt.s32.totalorder %s239, 15
      %s241 = scalar_select %p240, %s239, 15
      %p242 = scmp.lt.s32.totalorder %s21, 0
      %s243 = scalar_select %p242, %s21, 0
      %s244 = sadd.s32 %s243, %s241
      %s245 = smul.addr %s244, 4
      %s246 = scalar_lea.vmem %s2, %s245
      %p247 = pneg %p146
      %p248 = pneg %p143
      %p249 = scmp.lt.s32.totalorder %s22, 1
      %s250 = scalar_select %p249, %s22, 1
      %p251 = scmp.lt.s32.totalorder %s21, 0
      %s252 = scalar_select %p251, %s21, 0
      %s253 = sadd.s32 %s252, %s250
      %s254 = scalar_lea.vmem %s3, %s253
      %p255 = pneg %p174
      %p256 = pneg %p171
      %p257 = scmp.lt.s32.totalorder %s22, 1
      %s258 = scalar_select %p257, %s22, 1
      %p259 = scmp.lt.s32.totalorder %s21, 0
      %s260 = scalar_select %p259, %s21, 0
      %s261 = sadd.s32 %s260, %s258
      %s262 = scalar_lea.vmem %s4, %s261
      %s263 = smul.u32 %s22, 2
      %s264 = sadd.s32 %s263, %s23
      %s265 = smul.u32 4, %s264
      %p266 = scmp.lt.s32.totalorder %s265, 15
      %s267 = scalar_select %p266, %s265, 15
      %s268 = smul.addr %s267, 4
      %s269 = scalar_lea.vmem %s0, %s268
      %s270 = smul.u32 %s22, 2
      %s271 = sadd.s32 %s270, %s23
      %s272 = smul.u32 4, %s271
      %p273 = scmp.lt.s32.totalorder %s21, 0
      %s274 = scalar_select %p273, %s21, 0
      %s275 = smul.addr %s274, 4
      %s276 = scalar_lea.vmem %s1, %s275
      %s277 = smul.u32 %s22, 2
      %s278 = sadd.s32 %s277, %s23
      %s279 = smul.u32 4, %s278
      %p280 = scmp.lt.s32.totalorder %s279, 15
      %s281 = scalar_select %p280, %s279, 15
      %p282 = scmp.lt.s32.totalorder %s21, 0
      %s283 = scalar_select %p282, %s21, 0
      %s284 = sadd.s32 %s283, %s281
      %s285 = smul.addr %s284, 4
      %s286 = scalar_lea.vmem %s2, %s285
      %s287 = smul.u32 %s22, 2
      %s288 = sadd.s32 %s287, %s23
      %s289 = smul.u32 4, %s288
      %p290 = scmp.lt.s32.totalorder %s22, 1
      %s291 = scalar_select %p290, %s22, 1
      %p292 = scmp.lt.s32.totalorder %s21, 0
      %s293 = scalar_select %p292, %s21, 0
      %s294 = sadd.s32 %s293, %s291
      %s295 = scalar_lea.vmem %s3, %s294
      %p296 = scmp.lt.s32.totalorder %s22, 1
      %s297 = scalar_select %p296, %s22, 1
      %p298 = scmp.lt.s32.totalorder %s21, 0
      %s299 = scalar_select %p298, %s21, 0
      %s300 = sadd.s32 %s299, %s297
      %s301 = scalar_lea.vmem %s4, %s300
      %v303 = vld [vmem:[%s269] sm:$0xf]
      %v304 = vld [vmem:[%s269 + $0x4] sm:$0xf]
      %v305 = vld [vmem:[%s269 + $0x8] sm:$0xf]
      %v306 = vld [vmem:[%s269 + $0xc] sm:$0xf]
      %v307 = vld [vmem:[%s276] sm:$0xf]
      %v308 = vld [vmem:[%s276 + $0x4] sm:$0xf]
      %v309 = vld [vmem:[%s276 + $0x8] sm:$0xf]
      %v310 = vld [vmem:[%s276 + $0xc] sm:$0xf]
      %v311 = vld [vmem:[%s276 + $0x10] sm:$0xf]
      %v312 = vld [vmem:[%s276 + $0x14] sm:$0xf]
      %v313 = vld [vmem:[%s276 + $0x18] sm:$0xf]
      %v314 = vld [vmem:[%s276 + $0x1c] sm:$0xf]
      %v315 = vld [vmem:[%s276 + $0x20] sm:$0xf]
      %v316 = vld [vmem:[%s276 + $0x24] sm:$0xf]
      %v317 = vld [vmem:[%s276 + $0x28] sm:$0xf]
      %v318 = vld [vmem:[%s276 + $0x2c] sm:$0xf]
      %v319 = vld [vmem:[%s276 + $0x30] sm:$0xf]
      %v320 = vld [vmem:[%s276 + $0x34] sm:$0xf]
      %v321 = vld [vmem:[%s276 + $0x38] sm:$0xf]
      %v322 = vld [vmem:[%s276 + $0x3c] sm:$0xf]
      %v327 = vunpack.c.l.b16 %v303
      %v328 = vunpack.c.l.b16 %v304
      %v329 = vunpack.c.l.b16 %v305
      %v330 = vunpack.c.l.b16 %v306
      %v331 = vpack.c.b16 %v328, %v327
      %v332 = vpack.c.b16 %v330, %v329
      %v351 = vunpack.c.l.b16 %v307
      %v352 = vunpack.c.l.b16 %v308
      %v353 = vunpack.c.l.b16 %v309
      %v354 = vunpack.c.l.b16 %v310
      %v355 = vunpack.c.l.b16 %v311
      %v356 = vunpack.c.l.b16 %v312
      %v357 = vunpack.c.l.b16 %v313
      %v358 = vunpack.c.l.b16 %v314
      %v359 = vunpack.c.l.b16 %v315
      %v360 = vunpack.c.l.b16 %v316
      %v361 = vunpack.c.l.b16 %v317
      %v362 = vunpack.c.l.b16 %v318
      %v363 = vunpack.c.l.b16 %v319
      %v364 = vunpack.c.l.b16 %v320
      %v365 = vunpack.c.l.b16 %v321
      %v366 = vunpack.c.l.b16 %v322
      %v367 = vpack.c.b16 %v352, %v351
      %v368 = vpack.c.b16 %v354, %v353
      %v369 = vpack.c.b16 %v356, %v355
      %v370 = vpack.c.b16 %v358, %v357
      %v371 = vpack.c.b16 %v360, %v359
      %v372 = vpack.c.b16 %v362, %v361
      %v373 = vpack.c.b16 %v364, %v363
      %v374 = vpack.c.b16 %v366, %v365
      %383 = vmatprep.subr.bf16.mxu0 0
      %384 = vmatpush1.bf16.msra.mxu0 %v367
      %385 = vmatprep.subr.bf16.mxu0 0
      %386 = vmatpush1.bf16.msra.mxu0 %v368
      %387 = vmatprep.subr.bf16.mxu0 0
      %388 = vmatpush1.bf16.msra.mxu0 %v369
      %389 = vmatprep.subr.bf16.mxu0 0
      %390 = vmatpush1.bf16.msra.mxu0 %v370
      %391 = vmatprep.subr.bf16.mxu0 0
      %392 = vmatpush1.bf16.msra.mxu0 %v371
      %393 = vmatprep.subr.bf16.mxu0 0
      %394 = vmatpush1.bf16.msra.mxu0 %v372
      %395 = vmatprep.subr.bf16.mxu0 0
      %396 = vmatpush1.bf16.msra.mxu0 %v373
      %397 = vmatprep.subr.bf16.mxu0 0
      %398 = vmatpush1.bf16.msra.mxu0 %v374
      %399 = vmatprep.subr.bf16.mxu0 0
      %400 = vmatpush1.bf16.msra.mxu0 0
      %401 = vmatprep.subr.bf16.mxu0 0
      %402 = vmatpush1.bf16.msra.mxu0 0
      %403 = vmatprep.subr.bf16.mxu0 0
      %404 = vmatpush1.bf16.msra.mxu0 0
      %405 = vmatprep.subr.bf16.mxu0 0
      %406 = vmatpush1.bf16.msra.mxu0 0
      %407 = vmatprep.subr.bf16.mxu0 0
      %408 = vmatpush1.bf16.msra.mxu0 0
      %409 = vmatprep.subr.bf16.mxu0 0
      %410 = vmatpush1.bf16.msra.mxu0 0
      %411 = vmatprep.subr.bf16.mxu0 0
      %412 = vmatpush1.bf16.msra.mxu0 0
      %413 = vmatprep.subr.bf16.mxu0 0
      %414 = vmatpush1.bf16.msra.mxu0 0
      %415 = vmatprep.mubr.bf16.mxu0 0
      %416 = vmatmul.mubr.bf16.gmra.mrb[0].mxu0 %v331
      %v417 = vpop.f32.mrb[0].mxu0
      %v418 = vadd.f32 0.0, %v417
      %v419 = vpop.f32.mrb[0].mxu0
      %v420 = vpop.f32.mrb[0].mxu0
      %v421 = vadd.f32 0.0, %v420
      %v422 = vpop.f32.mrb[0].mxu0
      %423 = vmatprep.mubr.bf16.mxu0 0
      %424 = vmatmul.mubr.bf16.gmra.mrb[0].mxu0 %v332
      %v425 = vpop.f32.mrb[0].mxu0
      %v426 = vadd.f32 0.0, %v425
      %v427 = vpop.f32.mrb[0].mxu0
      %v428 = vpop.f32.mrb[0].mxu0
      %v429 = vadd.f32 0.0, %v428
      %v430 = vpop.f32.mrb[0].mxu0
      %431 = vdwg.mxu0
      %v432 = vpack.c.bf16 %v421, %v418
      %v433 = vpack.c.bf16 %v429, %v426
      %v436 = vunpack.c.l.b16 %v432
      %v437 = vunpack.c.h.b16 %v432
      %v438 = vunpack.c.l.b16 %v433
      %v439 = vunpack.c.h.b16 %v433
      %v440 = vpack.c.b16 %v436, %v436
      %v441 = vpack.c.b16 %v437, %v437
      %v442 = vpack.c.b16 %v438, %v438
      %v443 = vpack.c.b16 %v439, %v439
      %448 = vst [vmem:[%s286] sm:$0xf] %v440
      %449 = vst [vmem:[%s286 + $0x4] sm:$0xf] %v441
      %450 = vst [vmem:[%s286 + $0x8] sm:$0xf] %v442
      %451 = vst [vmem:[%s286 + $0xc] sm:$0xf] %v443
      %p452 = scmp.eq.s32.totalorder %s23, 0
      // Predicated region
      $region29: #{unet_down.2} parent=27 // pred_check
        %p453 = pneg %p452
      $region30: #{unet_down.2} parent=27 // pred_check_branch
        %455 = sbr.rel (%p453) target = $region32
      $region31: #{unet_down.2} parent=27 // pred_region
        %456 = vst [vmem:[%s295] sm:$0x1] 0.0
        %457 = vst [vmem:[%s301] sm:$0x1] 0.0
      $region32: #{unet_down.2} parent=27 // pred_fallthru
        _
      %v458 = vld [vmem:[%s295] sm:$0x1]
      %v459 = vadd.f32 %v418, %v421
      %v460 = vadd.f32 %v459, %v426
      %v461 = vadd.f32 %v460, %v429
      %v462 = vrot.slane %v461, 4
      %v463 = vadd.f32 %v461, %v462
      %v464 = vrot.slane %v463, 2
      %v465 = vadd.f32 %v463, %v464
      %v466 = vrot.slane %v465, 1
      %v467 = vadd.f32 %v465, %v466
      %v468 = vadd.f32 %v458, %v467
      %469 = vst [vmem:[%s295] sm:$0x1] %v468
      %v470 = vld [vmem:[%s301] sm:$0x1]
      %v471 = vmul.f32 %v418, %v418
      %v472 = vmul.f32 %v421, %v421
      %v473 = vmul.f32 %v426, %v426
      %v474 = vmul.f32 %v429, %v429
      %v475 = vadd.f32 %v471, %v472
      %v476 = vadd.f32 %v475, %v473
      %v477 = vadd.f32 %v476, %v474
      %v478 = vrot.slane %v477, 4
      %v479 = vadd.f32 %v477, %v478
      %v480 = vrot.slane %v479, 2
      %v481 = vadd.f32 %v479, %v480
      %v482 = vrot.slane %v481, 1
      %v483 = vadd.f32 %v481, %v482
      %v484 = vadd.f32 %v470, %v483
      %485 = vst [vmem:[%s301] sm:$0x1] %v484
      %s486 = smul.u32 %s22, 2
      %s487 = sadd.s32 %s486, %s23
      %s488 = smul.u32 4, %s487
      %p489 = scmp.lt.s32.totalorder %s488, 15
      %s490 = scalar_select %p489, %s488, 15
      %p491 = scmp.lt.s32.totalorder %s21, 0
      %s492 = scalar_select %p491, %s21, 0
      %s493 = sadd.s32 %s492, %s490
      %s494 = smul.addr %s493, 4
      %s495 = scalar_lea.vmem %s2, %s494
      %p496 = scmp.lt.s32.totalorder %s22, 1
      %s497 = scalar_select %p496, %s22, 1
      %p498 = scmp.lt.s32.totalorder %s21, 0
      %s499 = scalar_select %p498, %s21, 0
      %s500 = sadd.s32 %s499, %s497
      %s501 = scalar_lea.vmem %s3, %s500
      %p502 = scmp.lt.s32.totalorder %s22, 1
      %s503 = scalar_select %p502, %s22, 1
      %p504 = scmp.lt.s32.totalorder %s21, 0
      %s505 = scalar_select %p504, %s21, 0
      %s506 = sadd.s32 %s505, %s503
      %s507 = scalar_lea.vmem %s4, %s506
      // Predicated region
      $region33: #{unet_down.2} parent=27 // pred_check
        %p508 = pneg %p115
      $region34: #{unet_down.2} parent=27 // pred_check_branch
        %510 = sbr.rel (%p508) target = $region36
      $region35: #{unet_down.2} parent=27 // pred_region
        %s511 = smul.u32 %s22, 2
        %s512 = sadd.s32 %s511, %s23
        %s513 = smul.u32 4, %s512
      $region36: #{unet_down.2} parent=27 // pred_fallthru
        _
      // Predicated region
      $region37: #{unet_down.2} parent=27 // pred_check
        %p514 = pneg %p143
      $region38: #{unet_down.2} parent=27 // pred_check_branch
        %516 = sbr.rel (%p514) target = $region40
      $region39: #{unet_down.2} parent=27 // pred_region
        _
      $region40: #{unet_down.2} parent=27 // pred_fallthru
        _
      // Predicated region
      $region41: #{unet_down.2} parent=27 // pred_check
        %p517 = pneg %p171
      $region42: #{unet_down.2} parent=27 // pred_check_branch
        %519 = sbr.rel (%p517) target = $region44
      $region43: #{unet_down.2} parent=27 // pred_region
        _
      $region44: #{unet_down.2} parent=27 // pred_fallthru
        _
    $region28: #{unet_down.2} parent=5 // pred_fallthru
      _
    %p520 = scmp.le.s32.totalorder 2, %s11
    // Predicated region
    $region45: #{unet_down.2} parent=5 // pred_check
      %p521 = pneg %p520
    $region46: #{unet_down.2} parent=5 // pred_check_branch
      %523 = sbr.rel (%p521) target = $region48
    $region47: #{unet_down.2} parent=5 // pred_region
      %s524 = ssub.s32 %s11, 2
      // Predicated region
      $region49: #{unet_down.2} parent=47 // pred_check
        %p525 = pneg %p121
      $region50: #{unet_down.2} parent=47 // pred_check_branch
        %527 = sbr.rel (%p525) target = $region52
      $region51: #{unet_down.2} parent=47 // pred_region
        %s528 = smul.u32 %s25, 2
        %s529 = sadd.s32 %s528, %s26
        %s530 = smul.u32 4, %s529
        %p531 = scmp.lt.s32.totalorder %s530, 15
        %s532 = scalar_select %p531, %s530, 15
        %p533 = scmp.lt.s32.totalorder %s24, 0
        %s534 = scalar_select %p533, %s24, 0
        %s535 = sadd.s32 %s534, %s532
        %s536 = smul.addr %s535, 4
        %s537 = scalar_lea.vmem %s2, %s536
      $region52: #{unet_down.2} parent=47 // pred_fallthru
        _
      // Predicated region
      $region53: #{unet_down.2} parent=47 // pred_check
        %p538 = pneg %p149
      $region54: #{unet_down.2} parent=47 // pred_check_branch
        %540 = sbr.rel (%p538) target = $region56
      $region55: #{unet_down.2} parent=47 // pred_region
        %p541 = scmp.lt.s32.totalorder %s25, 1
        %s542 = scalar_select %p541, %s25, 1
        %p543 = scmp.lt.s32.totalorder %s24, 0
        %s544 = scalar_select %p543, %s24, 0
        %s545 = sadd.s32 %s544, %s542
        %s546 = scalar_lea.vmem %s3, %s545
      $region56: #{unet_down.2} parent=47 // pred_fallthru
        _
      // Predicated region
      $region57: #{unet_down.2} parent=47 // pred_check
        %p547 = pneg %p177
      $region58: #{unet_down.2} parent=47 // pred_check_branch
        %549 = sbr.rel (%p547) target = $region60
      $region59: #{unet_down.2} parent=47 // pred_region
        %p550 = scmp.lt.s32.totalorder %s25, 1
        %s551 = scalar_select %p550, %s25, 1
        %p552 = scmp.lt.s32.totalorder %s24, 0
        %s553 = scalar_select %p552, %s24, 0
        %s554 = sadd.s32 %s553, %s551
        %s555 = scalar_lea.vmem %s4, %s554
      $region60: #{unet_down.2} parent=47 // pred_fallthru
        _
    $region48: #{unet_down.2} parent=5 // pred_fallthru
      _
  $region6: #{unet_down.2} parent=0 // loop_footer
    %s15 = sadd.s32 1, %s11
  $region7: #{unet_down.2} parent=0 // loop_footer_branch
    %10 = sbr.rel target = $region3
  $region8: #{unet_down.2} parent=0 // loop_exit
    _

// kernel: unet_down.3
$region0: #{unet_down.3}
  #allocation0 [shape = 'u32[]', space=smem, size = 0x4, offset = 0x4, fixed_abs, tag = 'smem constant byte address 0x4 - core index']
  #allocation1 [shape = 'u32[144,128]{1,0:T(1,128)}', space=vmem, size = 0x12000, scoped, tag = 'internal scratch']
  %s0 = inlined_call_operand.vmem [shape: bf16[128,128], index: 0, kind: input, shape index: {}]
  %s1 = inlined_call_operand.vmem [shape: f32[1,128], index: 1, kind: input, shape index: {}]
  %s2 = inlined_call_operand.vmem [shape: f32[1,128], index: 2, kind: input, shape index: {}]
  %s3 = inlined_call_operand.vmem [shape: f32[128,128], index: 3, kind: output, shape index: {}]
  %s4 = sld [smem:[#allocation0]]
  $region22: #{unet_down.3} parent=0
    _
  %s6 = ssub.s32 1, %s4
  %s7 = scalar_select 0, %s6, %s4
  // Predicated region
  $region2: #{unet_down.3} parent=0 // pred_check
    _
  $region3: #{unet_down.3} parent=0 // pred_check_branch
    %9 = sbr.rel (0) target = $region5
  $region4: #{unet_down.3} parent=0 // pred_region
    _
  $region5: #{unet_down.3} parent=0 // pred_fallthru
    _
  // Predicated region
  $region6: #{unet_down.3} parent=0 // pred_check
    _
  $region7: #{unet_down.3} parent=0 // pred_check_branch
    %11 = sbr.rel (0) target = $region9
  $region8: #{unet_down.3} parent=0 // pred_region
    _
  $region9: #{unet_down.3} parent=0 // pred_fallthru
    _
  // Predicated region
  $region10: #{unet_down.3} parent=0 // pred_check
    _
  $region11: #{unet_down.3} parent=0 // pred_check_branch
    %13 = sbr.rel (0) target = $region13
  $region12: #{unet_down.3} parent=0 // pred_region
    _
  $region13: #{unet_down.3} parent=0 // pred_fallthru
    _
  %v14 = vld [vmem:[%s0] sm:$0xf]
  %v15 = vld [vmem:[%s0 + $0x4] sm:$0xf]
  %v16 = vld [vmem:[%s0 + $0x8] sm:$0xf]
  %v17 = vld [vmem:[%s0 + $0xc] sm:$0xf]
  %v18 = vld [vmem:[%s0 + $0x10] sm:$0xf]
  %v19 = vld [vmem:[%s0 + $0x14] sm:$0xf]
  %v20 = vld [vmem:[%s0 + $0x18] sm:$0xf]
  %v21 = vld [vmem:[%s0 + $0x1c] sm:$0xf]
  %v22 = vld [vmem:[%s0 + $0x20] sm:$0xf]
  %v23 = vld [vmem:[%s0 + $0x24] sm:$0xf]
  %v24 = vld [vmem:[%s0 + $0x28] sm:$0xf]
  %v25 = vld [vmem:[%s0 + $0x2c] sm:$0xf]
  %v26 = vld [vmem:[%s0 + $0x30] sm:$0xf]
  %v27 = vld [vmem:[%s0 + $0x34] sm:$0xf]
  %v28 = vld [vmem:[%s0 + $0x38] sm:$0xf]
  %v29 = vld [vmem:[%s0 + $0x3c] sm:$0xf]
  %v30 = vunpack.c.l.bf16 %v14
  %v31 = vunpack.c.l.bf16 %v15
  %v32 = vunpack.c.l.bf16 %v16
  %v33 = vunpack.c.l.bf16 %v17
  %v34 = vunpack.c.l.bf16 %v18
  %v35 = vunpack.c.l.bf16 %v19
  %v36 = vunpack.c.l.bf16 %v20
  %v37 = vunpack.c.l.bf16 %v21
  %v38 = vunpack.c.l.bf16 %v22
  %v39 = vunpack.c.l.bf16 %v23
  %v40 = vunpack.c.l.bf16 %v24
  %v41 = vunpack.c.l.bf16 %v25
  %v42 = vunpack.c.l.bf16 %v26
  %v43 = vunpack.c.l.bf16 %v27
  %v44 = vunpack.c.l.bf16 %v28
  %v45 = vunpack.c.l.bf16 %v29
  %v46 = vld [vmem:[%s1] sm:$0x1]
  %v48 = vlaneseq
  %v49 = vshrl.u32 %v48, 7
  %v50 = vsub.s32 0, %v49
  %v51 = vrot.slane %v46, %v50
  %v53 = vmul.f32 %v30, %v51
  %v54 = vmul.f32 %v31, %v51
  %v55 = vmul.f32 %v32, %v51
  %v56 = vmul.f32 %v33, %v51
  %v57 = vmul.f32 %v34, %v51
  %v58 = vmul.f32 %v35, %v51
  %v59 = vmul.f32 %v36, %v51
  %v60 = vmul.f32 %v37, %v51
  %v61 = vmul.f32 %v38, %v51
  %v62 = vmul.f32 %v39, %v51
  %v63 = vmul.f32 %v40, %v51
  %v64 = vmul.f32 %v41, %v51
  %v65 = vmul.f32 %v42, %v51
  %v66 = vmul.f32 %v43, %v51
  %v67 = vmul.f32 %v44, %v51
  %v68 = vmul.f32 %v45, %v51
  %v69 = vld [vmem:[%s2] sm:$0x1]
  %v71 = vlaneseq
  %v72 = vshrl.u32 %v71, 7
  %v73 = vsub.s32 0, %v72
  %v74 = vrot.slane %v69, %v73
  %v76 = vadd.f32 %v53, %v74
  %v77 = vadd.f32 %v54, %v74
  %v78 = vadd.f32 %v55, %v74
  %v79 = vadd.f32 %v56, %v74
  %v80 = vadd.f32 %v57, %v74
  %v81 = vadd.f32 %v58, %v74
  %v82 = vadd.f32 %v59, %v74
  %v83 = vadd.f32 %v60, %v74
  %v84 = vadd.f32 %v61, %v74
  %v85 = vadd.f32 %v62, %v74
  %v86 = vadd.f32 %v63, %v74
  %v87 = vadd.f32 %v64, %v74
  %v88 = vadd.f32 %v65, %v74
  %v89 = vadd.f32 %v66, %v74
  %v90 = vadd.f32 %v67, %v74
  %v91 = vadd.f32 %v68, %v74
  %vm92 = vcmp.gt.f32.partialorder %v76, 0.0
  %vm93 = vcmp.gt.f32.partialorder %v77, 0.0
  %vm94 = vcmp.gt.f32.partialorder %v78, 0.0
  %vm95 = vcmp.gt.f32.partialorder %v79, 0.0
  %vm96 = vcmp.gt.f32.partialorder %v80, 0.0
  %vm97 = vcmp.gt.f32.partialorder %v81, 0.0
  %vm98 = vcmp.gt.f32.partialorder %v82, 0.0
  %vm99 = vcmp.gt.f32.partialorder %v83, 0.0
  %vm100 = vcmp.gt.f32.partialorder %v84, 0.0
  %vm101 = vcmp.gt.f32.partialorder %v85, 0.0
  %vm102 = vcmp.gt.f32.partialorder %v86, 0.0
  %vm103 = vcmp.gt.f32.partialorder %v87, 0.0
  %vm104 = vcmp.gt.f32.partialorder %v88, 0.0
  %vm105 = vcmp.gt.f32.partialorder %v89, 0.0
  %vm106 = vcmp.gt.f32.partialorder %v90, 0.0
  %vm107 = vcmp.gt.f32.partialorder %v91, 0.0
  %v108 = vmul.f32 %v76, 0.2
  %v109 = vmul.f32 %v77, 0.2
  %v110 = vmul.f32 %v78, 0.2
  %v111 = vmul.f32 %v79, 0.2
  %v112 = vmul.f32 %v80, 0.2
  %v113 = vmul.f32 %v81, 0.2
  %v114 = vmul.f32 %v82, 0.2
  %v115 = vmul.f32 %v83, 0.2
  %v116 = vmul.f32 %v84, 0.2
  %v117 = vmul.f32 %v85, 0.2
  %v118 = vmul.f32 %v86, 0.2
  %v119 = vmul.f32 %v87, 0.2
  %v120 = vmul.f32 %v88, 0.2
  %v121 = vmul.f32 %v89, 0.2
  %v122 = vmul.f32 %v90, 0.2
  %v123 = vmul.f32 %v91, 0.2
  %v124 = vsel %vm92, %v76, %v108
  %v125 = vsel %vm93, %v77, %v109
  %v126 = vsel %vm94, %v78, %v110
  %v127 = vsel %vm95, %v79, %v111
  %v128 = vsel %vm96, %v80, %v112
  %v129 = vsel %vm97, %v81, %v113
  %v130 = vsel %vm98, %v82, %v114
  %v131 = vsel %vm99, %v83, %v115
  %v132 = vsel %vm100, %v84, %v116
  %v133 = vsel %vm101, %v85, %v117
  %v134 = vsel %vm102, %v86, %v118
  %v135 = vsel %vm103, %v87, %v119
  %v136 = vsel %vm104, %v88, %v120
  %v137 = vsel %vm105, %v89, %v121
  %v138 = vsel %vm106, %v90, %v122
  %v139 = vsel %vm107, %v91, %v123
  %140 = vst [vmem:[%s3] sm:$0xff] %v124
  %141 = vst [vmem:[%s3 + $0x8] sm:$0xff] %v125
  %142 = vst [vmem:[%s3 + $0x10] sm:$0xff] %v126
  %143 = vst [vmem:[%s3 + $0x18] sm:$0xff] %v127
  %144 = vst [vmem:[%s3 + $0x20] sm:$0xff] %v128
  %145 = vst [vmem:[%s3 + $0x28] sm:$0xff] %v129
  %146 = vst [vmem:[%s3 + $0x30] sm:$0xff] %v130
  %147 = vst [vmem:[%s3 + $0x38] sm:$0xff] %v131
  %148 = vst [vmem:[%s3 + $0x40] sm:$0xff] %v132
  %149 = vst [vmem:[%s3 + $0x48] sm:$0xff] %v133
  %150 = vst [vmem:[%s3 + $0x50] sm:$0xff] %v134
  %151 = vst [vmem:[%s3 + $0x58] sm:$0xff] %v135
  %152 = vst [vmem:[%s3 + $0x60] sm:$0xff] %v136
  %153 = vst [vmem:[%s3 + $0x68] sm:$0xff] %v137
  %154 = vst [vmem:[%s3 + $0x70] sm:$0xff] %v138
  %155 = vst [vmem:[%s3 + $0x78] sm:$0xff] %v139
  // Predicated region
  $region14: #{unet_down.3} parent=0 // pred_check
    _
  $region15: #{unet_down.3} parent=0 // pred_check_branch
    %157 = sbr.rel (0) target = $region17
  $region16: #{unet_down.3} parent=0 // pred_region
    _
  $region17: #{unet_down.3} parent=0 // pred_fallthru
    _
  // Predicated region
  $region18: #{unet_down.3} parent=0 // pred_check
    _
  $region19: #{unet_down.3} parent=0 // pred_check_branch
    %159 = sbr.rel (0) target = $region21
  $region20: #{unet_down.3} parent=0 // pred_region
    _
  $region21: #{unet_down.3} parent=0 // pred_fallthru
    _

</llo_original>
